<compile_context>
chip_gen: v5e
topology: v5e:2x2
jax: 0.10.0
libtpu: 0.0.40
codegen_flags: <defaults>
</compile_context>

<pallas_src>
import functools

import jax
import jax.numpy as jnp
from jax import lax
from jax.experimental import pallas as pl
from jax.experimental.pallas import tpu as pltpu

_EPS = 1e-5
_SLOPE = 0.1
_LANE = 128
_VMEM_LIMIT = 32 * 1024 * 1024


def _conv_stats_kernel(taps_ref, w_ref, y_ref, stats_ref, *, th, wo, ho, nrb):
    """Pass 1: 3x3/s2 conv as 3 accumulated (tile, 3*Cin)x(3*Cin, Cpad) dots + sum/sumsq.

    taps_ref: (1, 2, (th+1)*wo, 3*Cin)  -- row-parity slabs, column taps folded into channels
    w_ref:    (3, 3*Cin, Cpad)          -- per-kh weight slab (kw folded into rows)
    """
    lo = th * wo
    cpad = y_ref.shape[-1]
    acc = jnp.zeros((lo, cpad), jnp.float32)
    for kh in range(3):
        a, dh = kh % 2, kh // 2            # input-row parity / +1-row shift inside the slab
        lhs = taps_ref[0, a, dh * wo: dh * wo + lo, :]           # (lo, 3*Cin), native dtype
        acc = acc + jnp.dot(lhs, w_ref[kh],
                            preferred_element_type=jnp.float32)
    if nrb * th != ho:
        # Zero rows that belong to padded output rows so the BN statistics stay exact.
        rb = pl.program_id(0) % nrb
        oh = rb * th + lax.broadcasted_iota(jnp.int32, (lo, 1), 0) // wo
        acc = jnp.where(oh < ho, acc, 0.0)
    y_ref[0] = acc
    stats_ref[0, 0:1, :] = jnp.sum(acc, axis=0, keepdims=True)
    stats_ref[0, 1:2, :] = jnp.sum(acc * acc, axis=0, keepdims=True)


def _bn_act_kernel(y_ref, scale_ref, shift_ref, o_ref, *, slope):
    """Pass 2: y * scale + shift, then LeakyReLU."""
    z = y_ref[0] * scale_ref[...] + shift_ref[...]
    o_ref[0] = jnp.where(z > 0, z, slope * z).astype(o_ref.dtype)


def _pick_row_tile(ho, wo, cin, cpad, itemsize, budget=8 * 1024 * 1024):
    """Largest output-row tile whose (double-buffered) per-step footprint fits the budget."""
    def step_bytes(th):
        taps = 6 * (th + 1) * wo * cin * itemsize
        y = th * wo * cpad * 4
        return 2 * (taps + 2 * y)
    th = ho
    while th > 1 and step_bytes(th) > budget:
        th = (th + 1) // 2
    return th


def _build_tap_slabs(x_nhwc, th, ho, wo, nrb):
    """(N,H,W,Cin) -> (N*nrb, 2, (th+1)*Wo, 3*Cin) row-parity slabs (halo row included).

    The 3 column taps are concatenated along the channel axis so the kernel's
    contraction dimension is 3*Cin per kh.  Total bytes ~1.5x the input.
    """
    n, h, w, cin = x_nhwc.shape
    ho_p = nrb * th
    extra_rows = max(0, 2 * ho_p + 2 - (h + 2))
    xp = jnp.pad(x_nhwc, ((0, 0), (1, 1 + extra_rows), (1, 1), (0, 0)))
    row_idx = jnp.arange(nrb)[:, None] * th + jnp.arange(th + 1)[None, :]     # (nrb, th+1)
    parities = []
    for a in range(2):                      # input-row parity (kh % 2)
        xr = xp[:, a::2, :, :][:, row_idx, :, :]                 # (N, nrb, th+1, W+2, Cin)
        cols = [xr[:, :, :, kw: kw + 2 * wo: 2, :] for kw in range(3)]
        parities.append(jnp.concatenate(cols, axis=-1))          # (N, nrb, th+1, Wo, 3*Cin)
    taps = jnp.stack(parities, axis=2)                           # (N, nrb, 2, th+1, Wo, 3*Cin)
    return taps.reshape(n * nrb, 2, (th + 1) * wo, 3 * cin)


@jax.jit
def downsampling_layer(x_nchw, conv_weight_oihw, bn_gamma, bn_beta):
    """Forward: (N, Cin, H, W) -> (N, Cout, H//2, W//2)."""
    n, cin, h, w = x_nchw.shape
    cout = conv_weight_oihw.shape[0]
    ho = (h + 2 - 3) // 2 + 1
    wo = (w + 2 - 3) // 2 + 1
    cpad = ((cout + _LANE - 1) // _LANE) * _LANE

    # TODO(synk): drop the NCHW<->NHWC transposes if the surrounding model runs NHWC end-to-end.
    x_nhwc = jnp.transpose(x_nchw, (0, 2, 3, 1))

    th = _pick_row_tile(ho, wo, cin, cpad, x_nhwc.dtype.itemsize)
    nrb = -(-ho // th)                       # row blocks per image
    nb = n * nrb                             # grid size (M tiles)
    lo, lh = th * wo, (th + 1) * wo

    taps = _build_tap_slabs(x_nhwc, th, ho, wo, nrb)             # (NB, 2, Lh, 3*Cin)

    # (Cout, Cin, 3, 3) -> (3, 3*Cin, Cpad): row index is kw*Cin + c, matching the slab
    # channel concatenation.  Same dtype as activations (no in-kernel upcast).
    w_taps = jnp.transpose(conv_weight_oihw, (2, 3, 1, 0))       # (kh, kw, Cin, Cout)
    w_taps = jnp.pad(w_taps, ((0, 0), (0, 0), (0, 0), (0, cpad - cout)))
    w_taps = w_taps.reshape(3, 3 * cin, cpad).astype(x_nhwc.dtype)

    cp = pltpu.CompilerParams(dimension_semantics=("parallel",),
                              vmem_limit_bytes=_VMEM_LIMIT)

    # ---- Pass 1: conv + per-tile partial BN stats ----------------------------------
    y, stats = pl.pallas_call(
        functools.partial(_conv_stats_kernel, th=th, wo=wo, ho=ho, nrb=nrb),
        out_shape=(jax.ShapeDtypeStruct((nb, lo, cpad), jnp.float32),
                   jax.ShapeDtypeStruct((nb, 2, cpad), jnp.float32)),
        grid=(nb,),
        in_specs=[pl.BlockSpec((1, 2, lh, 3 * cin), lambda i: (i, 0, 0, 0)),
                  pl.BlockSpec((3, 3 * cin, cpad), lambda i: (0, 0, 0))],
        out_specs=(pl.BlockSpec((1, lo, cpad), lambda i: (i, 0, 0)),
                   pl.BlockSpec((1, 2, cpad), lambda i: (i, 0, 0))),
        compiler_params=cp,
        cost_estimate=pl.CostEstimate(
            flops=2 * nb * lo * 9 * cin * cpad,
            transcendentals=0,
            bytes_accessed=(taps.size * taps.dtype.itemsize
                            + w_taps.size * w_taps.dtype.itemsize
                            + nb * lo * cpad * 4 + nb * 2 * cpad * 4)),
    )(taps, w_taps)

    # ---- Global BatchNorm statistics (training mode: biased variance over N*Ho*Wo) --
    m_valid = n * ho * wo
    tot = jnp.sum(stats, axis=0)                                 # (2, Cpad)
    mean = tot[0] / m_valid
    var = jnp.maximum(tot[1] / m_valid - mean * mean, 0.0)
    inv = lax.rsqrt(var + _EPS)
    gamma_p = jnp.pad(bn_gamma.astype(jnp.float32), (0, cpad - cout))
    beta_p = jnp.pad(bn_beta.astype(jnp.float32), (0, cpad - cout))
    scale = (gamma_p * inv).reshape(1, cpad)
    shift = (beta_p - mean * gamma_p * inv).reshape(1, cpad)
    # TODO(synk): running_mean/running_var updates (PyTorch BN training side-effect) are not produced.

    # ---- Pass 2: normalize + affine + LeakyReLU -------------------------------------
    out = pl.pallas_call(
        functools.partial(_bn_act_kernel, slope=_SLOPE),
        out_shape=jax.ShapeDtypeStruct((nb, lo, cpad), x_nchw.dtype),
        grid=(nb,),
        in_specs=[pl.BlockSpec((1, lo, cpad), lambda i: (i, 0, 0)),
                  pl.BlockSpec((1, cpad), lambda i: (0, 0)),
                  pl.BlockSpec((1, cpad), lambda i: (0, 0))],
        out_specs=pl.BlockSpec((1, lo, cpad), lambda i: (i, 0, 0)),
        compiler_params=cp,
        cost_estimate=pl.CostEstimate(flops=2 * nb * lo * cpad, transcendentals=0,
                                      bytes_accessed=2 * nb * lo * cpad * 4),
    )(y, scale, shift)

    # (NB, th*Wo, Cpad) -> (N, Ho_p, Wo, Cpad) -> slice valid rows/channels -> NCHW
    out = out.reshape(n, nrb * th, wo, cpad)[:, :ho, :, :cout]
    return jnp.transpose(out, (0, 3, 1, 2))


if __name__ == "__main__":
    # Small shapes consistent with DownSamplingLayer(in_channels=4, out_channels=8).
    N, Cin, H, W = 2, 4, 16, 16
    Cout = 8

    key = jax.random.PRNGKey(0)
    kx, kw = jax.random.split(key)

    x = jax.random.normal(kx, (N, Cin, H, W), dtype=jnp.float32)
    conv_w = 0.1 * jax.random.normal(kw, (Cout, Cin, 3, 3), dtype=jnp.float32)
    bn_gamma = 1.0 + 0.05 * jnp.arange(Cout, dtype=jnp.float32)
    bn_beta = 0.01 * jnp.arange(Cout, dtype=jnp.float32)

    out = downsampling_layer(x, conv_w, bn_gamma, bn_beta)
    jax.block_until_ready(out)
    assert out.shape == (N, Cout, H // 2, W // 2), out.shape

    # Reference check (XLA conv + BN train-mode stats + LeakyReLU).
    ref = lax.conv_general_dilated(x, conv_w, window_strides=(2, 2),
                                   padding=((1, 1), (1, 1)),
                                   dimension_numbers=("NCHW", "OIHW", "NCHW"))
    m = ref.mean(axis=(0, 2, 3), keepdims=True)
    v = ref.var(axis=(0, 2, 3), keepdims=True)
    ref = (ref - m) * lax.rsqrt(v + _EPS)
    ref = ref * bn_gamma.reshape(1, -1, 1, 1) + bn_beta.reshape(1, -1, 1, 1)
    ref = jnp.where(ref > 0, ref, _SLOPE * ref)
    assert bool(jnp.allclose(out, ref, atol=1e-1, rtol=1e-1)), \
        float(jnp.max(jnp.abs(out - ref)))

    print("KERNEL_OK")
</pallas_src>

<mosaic_0001>
module attributes {stable_mosaic.version = 11 : i64} {
  func.func @_conv_stats_kernel(%arg0: i32, %arg1: memref<1x2x72x12xf32, #tpu.memory_space<vmem>>, %arg2: memref<3x12x128xf32, #tpu.memory_space<vmem>>, %arg3: memref<1x64x128xf32, #tpu.memory_space<vmem>>, %arg4: memref<1x2x128xf32, #tpu.memory_space<vmem>>) attributes {dimension_semantics = [#tpu.dimension_semantics<parallel>], iteration_bounds = array<i64: 2>, scalar_prefetch = 0 : i64, scratch_operands = 0 : i64, tpu.core_type = #tpu.core_type<tc>, window_params = [{transform_indices = @transform_0, window_bounds = array<i64: 1, 2, 72, 12>}, {pipeline_mode = #tpu.pipeline_mode<synchronous>, transform_indices = @transform_1, window_bounds = array<i64: 3, 12, 128>}, {transform_indices = @transform_2, window_bounds = array<i64: 1, 64, 128>}, {transform_indices = @transform_3, window_bounds = array<i64: 1, 2, 128>}]} {
    %cst = arith.constant 0.000000e+00 : f32
    %0 = vector.broadcast %cst : f32 to vector<64x128xf32>
    %c0 = arith.constant 0 : index
    %c0_0 = arith.constant 0 : index
    %c0_1 = arith.constant 0 : index
    %c0_2 = arith.constant 0 : index
    %1 = vector.load %arg1[%c0, %c0_0, %c0_1, %c0_2] : memref<1x2x72x12xf32, #tpu.memory_space<vmem>>, vector<1x1x64x12xf32>
    %2 = vector.shape_cast %1 : vector<1x1x64x12xf32> to vector<64x12xf32>
    %c0_3 = arith.constant 0 : index
    %c0_4 = arith.constant 0 : index
    %c0_5 = arith.constant 0 : index
    %3 = vector.load %arg2[%c0_3, %c0_4, %c0_5] : memref<3x12x128xf32, #tpu.memory_space<vmem>>, vector<1x12x128xf32>
    %4 = vector.shape_cast %3 : vector<1x12x128xf32> to vector<12x128xf32>
    %cst_6 = arith.constant dense<0.000000e+00> : vector<64x128xf32>
    %5 = tpu.matmul %2, %4, %cst_6 {dimension_numbers = #tpu.dot_dimension_numbers<[1], [0], [0], [1], [0, 0, 1, 1], [], []>} : vector<64x12xf32>, vector<12x128xf32>, vector<64x128xf32> -> vector<64x128xf32>
    %6 = arith.addf %0, %5 : vector<64x128xf32>
    %c0_7 = arith.constant 0 : index
    %c1 = arith.constant 1 : index
    %c0_8 = arith.constant 0 : index
    %c0_9 = arith.constant 0 : index
    %7 = vector.load %arg1[%c0_7, %c1, %c0_8, %c0_9] : memref<1x2x72x12xf32, #tpu.memory_space<vmem>>, vector<1x1x64x12xf32>
    %8 = vector.shape_cast %7 : vector<1x1x64x12xf32> to vector<64x12xf32>
    %c1_10 = arith.constant 1 : index
    %c0_11 = arith.constant 0 : index
    %c0_12 = arith.constant 0 : index
    %9 = vector.load %arg2[%c1_10, %c0_11, %c0_12] : memref<3x12x128xf32, #tpu.memory_space<vmem>>, vector<1x12x128xf32>
    %10 = vector.shape_cast %9 : vector<1x12x128xf32> to vector<12x128xf32>
    %cst_13 = arith.constant dense<0.000000e+00> : vector<64x128xf32>
    %11 = tpu.matmul %8, %10, %cst_13 {dimension_numbers = #tpu.dot_dimension_numbers<[1], [0], [0], [1], [0, 0, 1, 1], [], []>} : vector<64x12xf32>, vector<12x128xf32>, vector<64x128xf32> -> vector<64x128xf32>
    %12 = arith.addf %6, %11 : vector<64x128xf32>
    %c0_14 = arith.constant 0 : index
    %c0_15 = arith.constant 0 : index
    %c8 = arith.constant 8 : index
    %c0_16 = arith.constant 0 : index
    %13 = vector.load %arg1[%c0_14, %c0_15, %c8, %c0_16] : memref<1x2x72x12xf32, #tpu.memory_space<vmem>>, vector<1x1x64x12xf32>
    %14 = vector.shape_cast %13 : vector<1x1x64x12xf32> to vector<64x12xf32>
    %c2 = arith.constant 2 : index
    %c0_17 = arith.constant 0 : index
    %c0_18 = arith.constant 0 : index
    %15 = vector.load %arg2[%c2, %c0_17, %c0_18] : memref<3x12x128xf32, #tpu.memory_space<vmem>>, vector<1x12x128xf32>
    %16 = vector.shape_cast %15 : vector<1x12x128xf32> to vector<12x128xf32>
    %cst_19 = arith.constant dense<0.000000e+00> : vector<64x128xf32>
    %17 = tpu.matmul %14, %16, %cst_19 {dimension_numbers = #tpu.dot_dimension_numbers<[1], [0], [0], [1], [0, 0, 1, 1], [], []>} : vector<64x12xf32>, vector<12x128xf32>, vector<64x128xf32> -> vector<64x128xf32>
    %18 = arith.addf %12, %17 : vector<64x128xf32>
    %c0_20 = arith.constant 0 : index
    %c0_21 = arith.constant 0 : index
    %c0_22 = arith.constant 0 : index
    %19 = vector.load %arg3[%c0_20, %c0_21, %c0_22] : memref<1x64x128xf32, #tpu.memory_space<vmem>>, vector<1x64x128xf32>
    %20 = vector.shape_cast %19 : vector<1x64x128xf32> to vector<64x128xf32>
    %21 = vector.shape_cast %18 : vector<64x128xf32> to vector<1x64x128xf32>
    tpu.vector_store %arg3[%c0_20, %c0_21, %c0_22], %21 {strides = array<i32>} : memref<1x64x128xf32, #tpu.memory_space<vmem>>, vector<1x64x128xf32>,
    %cst_23 = arith.constant dense<0.000000e+00> : vector<128xf32>
    %22 = vector.multi_reduction <add>, %18, %cst_23 [0] : vector<64x128xf32> to vector<128xf32>
    %23 = vector.shape_cast %22 : vector<128xf32> to vector<1x128xf32>
    %c0_24 = arith.constant 0 : index
    %c0_25 = arith.constant 0 : index
    %c0_26 = arith.constant 0 : index
    %24 = vector.load %arg4[%c0_24, %c0_25, %c0_26] : memref<1x2x128xf32, #tpu.memory_space<vmem>>, vector<1x1x128xf32>
    %25 = vector.shape_cast %24 : vector<1x1x128xf32> to vector<1x128xf32>
    %26 = vector.shape_cast %23 : vector<1x128xf32> to vector<1x1x128xf32>
    tpu.vector_store %arg4[%c0_24, %c0_25, %c0_26], %26 {strides = array<i32>} : memref<1x2x128xf32, #tpu.memory_space<vmem>>, vector<1x1x128xf32>,
    %27 = arith.mulf %18, %18 : vector<64x128xf32>
    %cst_27 = arith.constant dense<0.000000e+00> : vector<128xf32>
    %28 = vector.multi_reduction <add>, %27, %cst_27 [0] : vector<64x128xf32> to vector<128xf32>
    %29 = vector.shape_cast %28 : vector<128xf32> to vector<1x128xf32>
    %c0_28 = arith.constant 0 : index
    %c1_29 = arith.constant 1 : index
    %c0_30 = arith.constant 0 : index
    %30 = vector.load %arg4[%c0_28, %c1_29, %c0_30] : memref<1x2x128xf32, #tpu.memory_space<vmem>>, vector<1x1x128xf32>
    %31 = vector.shape_cast %30 : vector<1x1x128xf32> to vector<1x128xf32>
    %32 = vector.shape_cast %29 : vector<1x128xf32> to vector<1x1x128xf32>
    tpu.vector_store %arg4[%c0_28, %c1_29, %c0_30], %32 {strides = array<i32>} : memref<1x2x128xf32, #tpu.memory_space<vmem>>, vector<1x1x128xf32>,
    return
  }
  func.func @transform_0(%arg0: i32) -> (i32, i32, i32, i32) {
    %c0_i32 = arith.constant 0 : i32
    %c0_i32_0 = arith.constant 0 : i32
    %c0_i32_1 = arith.constant 0 : i32
    %c0_i32_2 = arith.constant 0 : i32
    return %arg0, %c0_i32, %c0_i32_0, %c0_i32_1 : i32, i32, i32, i32
  }
  func.func @transform_1(%arg0: i32) -> (i32, i32, i32) {
    %c0_i32 = arith.constant 0 : i32
    %c0_i32_0 = arith.constant 0 : i32
    %c0_i32_1 = arith.constant 0 : i32
    %c0_i32_2 = arith.constant 0 : i32
    return %c0_i32, %c0_i32_0, %c0_i32_1 : i32, i32, i32
  }
  func.func @transform_2(%arg0: i32) -> (i32, i32, i32) {
    %c0_i32 = arith.constant 0 : i32
    %c0_i32_0 = arith.constant 0 : i32
    %c0_i32_1 = arith.constant 0 : i32
    return %arg0, %c0_i32, %c0_i32_0 : i32, i32, i32
  }
  func.func @transform_3(%arg0: i32) -> (i32, i32, i32) {
    %c0_i32 = arith.constant 0 : i32
    %c0_i32_0 = arith.constant 0 : i32
    %c0_i32_1 = arith.constant 0 : i32
    return %arg0, %c0_i32, %c0_i32_0 : i32, i32, i32
  }
}

module attributes {stable_mosaic.version = 11 : i64} {
  func.func @_bn_act_kernel(%arg0: i32, %arg1: memref<1x64x128xf32, #tpu.memory_space<vmem>>, %arg2: memref<1x128xf32, #tpu.memory_space<vmem>>, %arg3: memref<1x128xf32, #tpu.memory_space<vmem>>, %arg4: memref<1x64x128xf32, #tpu.memory_space<vmem>>) attributes {dimension_semantics = [#tpu.dimension_semantics<parallel>], iteration_bounds = array<i64: 2>, scalar_prefetch = 0 : i64, scratch_operands = 0 : i64, tpu.core_type = #tpu.core_type<tc>, window_params = [{transform_indices = @transform_0, window_bounds = array<i64: 1, 64, 128>}, {pipeline_mode = #tpu.pipeline_mode<synchronous>, transform_indices = @transform_1, window_bounds = array<i64: 1, 128>}, {pipeline_mode = #tpu.pipeline_mode<synchronous>, transform_indices = @transform_2, window_bounds = array<i64: 1, 128>}, {transform_indices = @transform_3, window_bounds = array<i64: 1, 64, 128>}]} {
    %c0 = arith.constant 0 : index
    %c0_0 = arith.constant 0 : index
    %c0_1 = arith.constant 0 : index
    %0 = vector.load %arg1[%c0, %c0_0, %c0_1] : memref<1x64x128xf32, #tpu.memory_space<vmem>>, vector<1x64x128xf32>
    %1 = vector.shape_cast %0 : vector<1x64x128xf32> to vector<64x128xf32>
    %c0_2 = arith.constant 0 : index
    %c0_3 = arith.constant 0 : index
    %2 = vector.load %arg2[%c0_2, %c0_3] : memref<1x128xf32, #tpu.memory_space<vmem>>, vector<1x128xf32>
    %3 = vector.broadcast %2 : vector<1x128xf32> to vector<64x128xf32>
    %4 = arith.mulf %1, %3 : vector<64x128xf32>
    %c0_4 = arith.constant 0 : index
    %c0_5 = arith.constant 0 : index
    %5 = vector.load %arg3[%c0_4, %c0_5] : memref<1x128xf32, #tpu.memory_space<vmem>>, vector<1x128xf32>
    %6 = vector.broadcast %5 : vector<1x128xf32> to vector<64x128xf32>
    %7 = arith.addf %4, %6 : vector<64x128xf32>
    %cst = arith.constant 0.000000e+00 : f32
    %8 = vector.broadcast %cst : f32 to vector<64x128xf32>
    %9 = arith.cmpf ogt, %7, %8 : vector<64x128xf32>
    %cst_6 = arith.constant 1.000000e-01 : f32
    %10 = vector.broadcast %cst_6 : f32 to vector<64x128xf32>
    %11 = arith.mulf %10, %7 : vector<64x128xf32>
    %12 = arith.select %9, %7, %11 : vector<64x128xi1>, vector<64x128xf32>
    %c0_7 = arith.constant 0 : index
    %c0_8 = arith.constant 0 : index
    %c0_9 = arith.constant 0 : index
    %13 = vector.load %arg4[%c0_7, %c0_8, %c0_9] : memref<1x64x128xf32, #tpu.memory_space<vmem>>, vector<1x64x128xf32>
    %14 = vector.shape_cast %13 : vector<1x64x128xf32> to vector<64x128xf32>
    %15 = vector.shape_cast %12 : vector<64x128xf32> to vector<1x64x128xf32>
    tpu.vector_store %arg4[%c0_7, %c0_8, %c0_9], %15 {strides = array<i32>} : memref<1x64x128xf32, #tpu.memory_space<vmem>>, vector<1x64x128xf32>,
    return
  }
  func.func @transform_0(%arg0: i32) -> (i32, i32, i32) {
    %c0_i32 = arith.constant 0 : i32
    %c0_i32_0 = arith.constant 0 : i32
    %c0_i32_1 = arith.constant 0 : i32
    return %arg0, %c0_i32, %c0_i32_0 : i32, i32, i32
  }
  func.func @transform_1(%arg0: i32) -> (i32, i32) {
    %c0_i32 = arith.constant 0 : i32
    %c0_i32_0 = arith.constant 0 : i32
    %c0_i32_1 = arith.constant 0 : i32
    return %c0_i32, %c0_i32_0 : i32, i32
  }
  func.func @transform_2(%arg0: i32) -> (i32, i32) {
    %c0_i32 = arith.constant 0 : i32
    %c0_i32_0 = arith.constant 0 : i32
    %c0_i32_1 = arith.constant 0 : i32
    return %c0_i32, %c0_i32_0 : i32, i32
  }
  func.func @transform_3(%arg0: i32) -> (i32, i32, i32) {
    %c0_i32 = arith.constant 0 : i32
    %c0_i32_0 = arith.constant 0 : i32
    %c0_i32_1 = arith.constant 0 : i32
    return %arg0, %c0_i32, %c0_i32_0 : i32, i32, i32
  }
}

</mosaic_0001>

<llo_original>
// kernel: downsampling_layer.3
$region0: #{downsampling_layer.3}
  #allocation0 [shape = 'u32[]', space=smem, size = 0x4, offset = 0x4, fixed_abs, tag = 'smem constant byte address 0x4 - core index']
  #allocation1 [shape = 'u32[72,128]{1,0:T(1,128)}', space=vmem, size = 0x9000, scoped, tag = 'internal scratch']
  %s0 = inlined_call_operand.vmem [shape: f32[2,64,128], index: 0, kind: input, shape index: {}]
  %s1 = inlined_call_operand.vmem [shape: f32[1,128], index: 1, kind: input, shape index: {}]
  %s2 = inlined_call_operand.vmem [shape: f32[1,128], index: 2, kind: input, shape index: {}]
  %s3 = inlined_call_operand.vmem [shape: f32[2,64,128], index: 3, kind: output, shape index: {}]
  %s4 = sld [smem:[#allocation0]]
  $region45: #{downsampling_layer.3} parent=0
    _
  %s6 = ssub.s32 1, %s4
  %s7 = scalar_select 0, %s6, %s4
  loop: start=0, step=1, limit=4
  $region2: #{downsampling_layer.3} parent=0 // loop_pre_header
    _
  $region3: #{downsampling_layer.3} parent=0 // loop_header
    %s9 = sphi 0, %s13
    %p10 = scmp.ge.s32.totalorder %s9, 4
    %s19 = sphi 0, %s21
    %s22 = sphi 0, %s19
    %s23 = sphi 0, %s22
    %s39 = sphi 0, %s23
    %s43 = sphi 0, %s43
    %s45 = sphi 0, %s43
    %s46 = sphi 0, %s45
    %s60 = sphi 0, %s46
    %s64 = sphi 0, %s64
    %s66 = sphi 0, %s64
    %s67 = sphi 0, %s66
    %s81 = sphi 0, %s67
    %s87 = sphi 0, %s89
    %s90 = sphi 0, %s87
    %s91 = sphi 0, %s90
    %s107 = sphi 0, %s91
  $region4: #{downsampling_layer.3} parent=0 // loop_header_branch
    %12 = sbr.rel (%p10) target = $region8
  $region5: #{downsampling_layer.3} parent=0 // loop_body
    %s14 = ssub.s32 %s9, 1
    %s15 = ssub.s32 %s9, 2
    %s16 = sadd.s32 %s9, 1
    %s17 = ssub.s32 %s9, %s16
    %p18 = scmp.eq.s32.totalorder %s17, 0
    %s20 = sadd.s32 %s19, 1
    %s21 = scalar_select %p18, %s19, %s20
    %p24 = pneg %p18
    %p25 = scmp.eq.s32.totalorder %s9, 1
    %p26 = por %p24, %p25
    %p27 = scmp.ne.s32.totalorder %s19, %s22
    %p28 = scmp.eq.s32.totalorder %s9, 0
    %p29 = por %p27, %p28
    %p30 = scmp.ne.s32.totalorder %s19, %s22
    %p31 = scmp.eq.s32.totalorder %s14, 1
    %p32 = por %p30, %p31
    %p33 = scmp.ne.s32.totalorder %s22, %s23
    %p34 = scmp.eq.s32.totalorder %s14, 0
    %p35 = por %p33, %p34
    %p36 = scmp.ne.s32.totalorder %s22, %s23
    %p37 = scmp.eq.s32.totalorder %s15, 1
    %p38 = por %p36, %p37
    %p40 = scmp.ne.s32.totalorder %s23, %s39
    %p41 = scmp.eq.s32.totalorder %s15, 0
    %p42 = por %p40, %p41
    %s44 = sadd.s32 %s43, 1
    %p47 = scmp.eq.s32.totalorder %s9, 1
    %p48 = scmp.ne.s32.totalorder %s43, %s45
    %p49 = scmp.eq.s32.totalorder %s9, 0
    %p50 = por %p48, %p49
    %p51 = scmp.ne.s32.totalorder %s43, %s45
    %p52 = scmp.eq.s32.totalorder %s14, 1
    %p53 = por %p51, %p52
    %p54 = scmp.ne.s32.totalorder %s45, %s46
    %p55 = scmp.eq.s32.totalorder %s14, 0
    %p56 = por %p54, %p55
    %p57 = scmp.ne.s32.totalorder %s45, %s46
    %p58 = scmp.eq.s32.totalorder %s15, 1
    %p59 = por %p57, %p58
    %p61 = scmp.ne.s32.totalorder %s46, %s60
    %p62 = scmp.eq.s32.totalorder %s15, 0
    %p63 = por %p61, %p62
    %s65 = sadd.s32 %s64, 1
    %p68 = scmp.eq.s32.totalorder %s9, 1
    %p69 = scmp.ne.s32.totalorder %s64, %s66
    %p70 = scmp.eq.s32.totalorder %s9, 0
    %p71 = por %p69, %p70
    %p72 = scmp.ne.s32.totalorder %s64, %s66
    %p73 = scmp.eq.s32.totalorder %s14, 1
    %p74 = por %p72, %p73
    %p75 = scmp.ne.s32.totalorder %s66, %s67
    %p76 = scmp.eq.s32.totalorder %s14, 0
    %p77 = por %p75, %p76
    %p78 = scmp.ne.s32.totalorder %s66, %s67
    %p79 = scmp.eq.s32.totalorder %s15, 1
    %p80 = por %p78, %p79
    %p82 = scmp.ne.s32.totalorder %s67, %s81
    %p83 = scmp.eq.s32.totalorder %s15, 0
    %p84 = por %p82, %p83
    %s85 = ssub.s32 %s9, %s16
    %p86 = scmp.eq.s32.totalorder %s85, 0
    %s88 = sadd.s32 %s87, 1
    %s89 = scalar_select %p86, %s87, %s88
    %p92 = pneg %p86
    %p93 = scmp.eq.s32.totalorder %s9, 1
    %p94 = por %p92, %p93
    %p95 = scmp.ne.s32.totalorder %s87, %s90
    %p96 = scmp.eq.s32.totalorder %s9, 0
    %p97 = por %p95, %p96
    %p98 = scmp.ne.s32.totalorder %s87, %s90
    %p99 = scmp.eq.s32.totalorder %s14, 1
    %p100 = por %p98, %p99
    %p101 = scmp.ne.s32.totalorder %s90, %s91
    %p102 = scmp.eq.s32.totalorder %s14, 0
    %p103 = por %p101, %p102
    %p104 = scmp.ne.s32.totalorder %s90, %s91
    %p105 = scmp.eq.s32.totalorder %s15, 1
    %p106 = por %p104, %p105
    %p108 = scmp.ne.s32.totalorder %s91, %s107
    %p109 = scmp.eq.s32.totalorder %s15, 0
    %p110 = por %p108, %p109
    %p111 = scmp.le.s32.totalorder 1, %s9
    %p112 = scmp.lt.s32.totalorder %s9, 3
    %p113 = pnand %p111, %p112
    %p114 = pneg %p113
    // Predicated region
    $region9: #{downsampling_layer.3} parent=5 // pred_check
      _
    $region10: #{downsampling_layer.3} parent=5 // pred_check_branch
      %116 = sbr.rel (%p113) target = $region12
    $region11: #{downsampling_layer.3} parent=5 // pred_region
      %s117 = ssub.s32 %s9, 1
      // Predicated region
      $region13: #{downsampling_layer.3} parent=11 // pred_check
        %p118 = pneg %p56
      $region14: #{downsampling_layer.3} parent=11 // pred_check_branch
        %120 = sbr.rel (%p118) target = $region16
      $region15: #{downsampling_layer.3} parent=11 // pred_region
        _
      $region16: #{downsampling_layer.3} parent=11 // pred_fallthru
        _
      // Predicated region
      $region17: #{downsampling_layer.3} parent=11 // pred_check
        %p121 = pneg %p77
      $region18: #{downsampling_layer.3} parent=11 // pred_check_branch
        %123 = sbr.rel (%p121) target = $region20
      $region19: #{downsampling_layer.3} parent=11 // pred_region
        _
      $region20: #{downsampling_layer.3} parent=11 // pred_fallthru
        _
    $region12: #{downsampling_layer.3} parent=5 // pred_fallthru
      _
    %p124 = scmp.lt.s32.totalorder %s9, 2
    // Predicated region
    $region21: #{downsampling_layer.3} parent=5 // pred_check
      %p125 = pneg %p124
    $region22: #{downsampling_layer.3} parent=5 // pred_check_branch
      %127 = sbr.rel (%p125) target = $region24
    $region23: #{downsampling_layer.3} parent=5 // pred_region
      // Predicated region
      $region25: #{downsampling_layer.3} parent=23 // pred_check
        %p128 = pneg %p29
      $region26: #{downsampling_layer.3} parent=23 // pred_check_branch
        %130 = sbr.rel (%p128) target = $region28
      $region27: #{downsampling_layer.3} parent=23 // pred_region
        %p131 = scmp.lt.s32.totalorder %s9, 1
        %s132 = scalar_select %p131, %s9, 1
        %s133 = smul.addr %s132, 8
        %s134 = smul.addr %s133, 8
        %s135 = scalar_lea.vmem %s0, %s134
      $region28: #{downsampling_layer.3} parent=23 // pred_fallthru
        _
    $region24: #{downsampling_layer.3} parent=5 // pred_fallthru
      _
    %p136 = scmp.le.s32.totalorder 1, %s9
    %p137 = scmp.lt.s32.totalorder %s9, 3
    %p138 = pnand %p136, %p137
    %p139 = pneg %p138
    // Predicated region
    $region29: #{downsampling_layer.3} parent=5 // pred_check
      _
    $region30: #{downsampling_layer.3} parent=5 // pred_check_branch
      %141 = sbr.rel (%p138) target = $region32
    $region31: #{downsampling_layer.3} parent=5 // pred_region
      %s142 = ssub.s32 %s9, 1
      %p143 = scmp.lt.s32.totalorder %s14, 1
      %s144 = scalar_select %p143, %s14, 1
      %s145 = smul.addr %s144, 8
      %s146 = smul.addr %s145, 8
      %s147 = scalar_lea.vmem %s0, %s146
      %p148 = pneg %p35
      %p149 = pneg %p32
      %p150 = pneg %p56
      %p151 = pneg %p53
      %p152 = pneg %p77
      %p153 = pneg %p74
      %p154 = pneg %p103
      %p155 = pneg %p100
      %p156 = scmp.lt.s32.totalorder %s14, 1
      %s157 = scalar_select %p156, %s14, 1
      %s158 = smul.addr %s157, 8
      %s159 = smul.addr %s158, 8
      %s160 = scalar_lea.vmem %s3, %s159
      %p161 = scmp.lt.s32.totalorder %s14, 1
      %s162 = scalar_select %p161, %s14, 1
      %s163 = smul.addr %s162, 8
      %s164 = smul.addr %s163, 8
      %s165 = scalar_lea.vmem %s0, %s164
      %p166 = scmp.lt.s32.totalorder %s14, 1
      %s167 = scalar_select %p166, %s14, 1
      %s168 = smul.addr %s167, 8
      %s169 = smul.addr %s168, 8
      %s170 = scalar_lea.vmem %s3, %s169
      %v171 = vld [vmem:[%s165] sm:$0xff]
      %v172 = vld [vmem:[%s165 + $0x8] sm:$0xff]
      %v173 = vld [vmem:[%s165 + $0x10] sm:$0xff]
      %v174 = vld [vmem:[%s165 + $0x18] sm:$0xff]
      %v175 = vld [vmem:[%s165 + $0x20] sm:$0xff]
      %v176 = vld [vmem:[%s165 + $0x28] sm:$0xff]
      %v177 = vld [vmem:[%s165 + $0x30] sm:$0xff]
      %v178 = vld [vmem:[%s165 + $0x38] sm:$0xff]
      %v179 = vld [vmem:[%s1] sm:$0x1]
      %v181 = vperm.slane %v179, 0
      %v183 = vmul.f32 %v171, %v181
      %v184 = vmul.f32 %v172, %v181
      %v185 = vmul.f32 %v173, %v181
      %v186 = vmul.f32 %v174, %v181
      %v187 = vmul.f32 %v175, %v181
      %v188 = vmul.f32 %v176, %v181
      %v189 = vmul.f32 %v177, %v181
      %v190 = vmul.f32 %v178, %v181
      %v191 = vld [vmem:[%s2] sm:$0x1]
      %v193 = vperm.slane %v191, 0
      %v195 = vadd.f32 %v183, %v193
      %v196 = vadd.f32 %v184, %v193
      %v197 = vadd.f32 %v185, %v193
      %v198 = vadd.f32 %v186, %v193
      %v199 = vadd.f32 %v187, %v193
      %v200 = vadd.f32 %v188, %v193
      %v201 = vadd.f32 %v189, %v193
      %v202 = vadd.f32 %v190, %v193
      %vm203 = vcmp.gt.f32.partialorder %v195, 0.0
      %vm204 = vcmp.gt.f32.partialorder %v196, 0.0
      %vm205 = vcmp.gt.f32.partialorder %v197, 0.0
      %vm206 = vcmp.gt.f32.partialorder %v198, 0.0
      %vm207 = vcmp.gt.f32.partialorder %v199, 0.0
      %vm208 = vcmp.gt.f32.partialorder %v200, 0.0
      %vm209 = vcmp.gt.f32.partialorder %v201, 0.0
      %vm210 = vcmp.gt.f32.partialorder %v202, 0.0
      %v211 = vmul.f32 %v195, 0.1
      %v212 = vmul.f32 %v196, 0.1
      %v213 = vmul.f32 %v197, 0.1
      %v214 = vmul.f32 %v198, 0.1
      %v215 = vmul.f32 %v199, 0.1
      %v216 = vmul.f32 %v200, 0.1
      %v217 = vmul.f32 %v201, 0.1
      %v218 = vmul.f32 %v202, 0.1
      %v219 = vsel %vm203, %v195, %v211
      %v220 = vsel %vm204, %v196, %v212
      %v221 = vsel %vm205, %v197, %v213
      %v222 = vsel %vm206, %v198, %v214
      %v223 = vsel %vm207, %v199, %v215
      %v224 = vsel %vm208, %v200, %v216
      %v225 = vsel %vm209, %v201, %v217
      %v226 = vsel %vm210, %v202, %v218
      %227 = vst [vmem:[%s170] sm:$0xff] %v219
      %228 = vst [vmem:[%s170 + $0x8] sm:$0xff] %v220
      %229 = vst [vmem:[%s170 + $0x10] sm:$0xff] %v221
      %230 = vst [vmem:[%s170 + $0x18] sm:$0xff] %v222
      %231 = vst [vmem:[%s170 + $0x20] sm:$0xff] %v223
      %232 = vst [vmem:[%s170 + $0x28] sm:$0xff] %v224
      %233 = vst [vmem:[%s170 + $0x30] sm:$0xff] %v225
      %234 = vst [vmem:[%s170 + $0x38] sm:$0xff] %v226
      %p235 = scmp.lt.s32.totalorder %s14, 1
      %s236 = scalar_select %p235, %s14, 1
      %s237 = smul.addr %s236, 8
      %s238 = smul.addr %s237, 8
      %s239 = scalar_lea.vmem %s3, %s238
      // Predicated region
      $region33: #{downsampling_layer.3} parent=31 // pred_check
        %p240 = pneg %p100
      $region34: #{downsampling_layer.3} parent=31 // pred_check_branch
        %242 = sbr.rel (%p240) target = $region36
      $region35: #{downsampling_layer.3} parent=31 // pred_region
        _
      $region36: #{downsampling_layer.3} parent=31 // pred_fallthru
        _
    $region32: #{downsampling_layer.3} parent=5 // pred_fallthru
      _
    %p243 = scmp.le.s32.totalorder 2, %s9
    // Predicated region
    $region37: #{downsampling_layer.3} parent=5 // pred_check
      %p244 = pneg %p243
    $region38: #{downsampling_layer.3} parent=5 // pred_check_branch
      %246 = sbr.rel (%p244) target = $region40
    $region39: #{downsampling_layer.3} parent=5 // pred_region
      %s247 = ssub.s32 %s9, 2
      // Predicated region
      $region41: #{downsampling_layer.3} parent=39 // pred_check
        %p248 = pneg %p106
      $region42: #{downsampling_layer.3} parent=39 // pred_check_branch
        %250 = sbr.rel (%p248) target = $region44
      $region43: #{downsampling_layer.3} parent=39 // pred_region
        %p251 = scmp.lt.s32.totalorder %s15, 1
        %s252 = scalar_select %p251, %s15, 1
        %s253 = smul.addr %s252, 8
        %s254 = smul.addr %s253, 8
        %s255 = scalar_lea.vmem %s3, %s254
      $region44: #{downsampling_layer.3} parent=39 // pred_fallthru
        _
    $region40: #{downsampling_layer.3} parent=5 // pred_fallthru
      _
  $region6: #{downsampling_layer.3} parent=0 // loop_footer
    %s13 = sadd.s32 1, %s9
  $region7: #{downsampling_layer.3} parent=0 // loop_footer_branch
    %8 = sbr.rel target = $region3
  $region8: #{downsampling_layer.3} parent=0 // loop_exit
    _

// kernel: downsampling_layer.2
$region0: #{downsampling_layer.2}
  #allocation0 [shape = 'u32[]', space=smem, size = 0x4, offset = 0x4, fixed_abs, tag = 'smem constant byte address 0x4 - core index']
  #allocation1 [shape = 'u32[72,128]{1,0:T(1,128)}', space=vmem, size = 0x9000, scoped, tag = 'internal scratch']
  %s0 = inlined_call_operand.vmem [shape: f32[2,2,72,12], index: 0, kind: input, shape index: {}]
  %s1 = inlined_call_operand.vmem [shape: f32[3,12,128], index: 1, kind: input, shape index: {}]
  %s2 = inlined_call_operand.vmem [shape: f32[2,64,128], index: 2, kind: output, shape index: {0}]
  %s3 = inlined_call_operand.vmem [shape: f32[2,2,128], index: 3, kind: output, shape index: {1}]
  %4 = xla_tuple %s2, %s3
  %s5 = sld [smem:[#allocation0]]
  $region49: #{downsampling_layer.2} parent=0
    _
  %s7 = ssub.s32 1, %s5
  %s8 = scalar_select 0, %s7, %s5
  loop: start=0, step=1, limit=4
  $region2: #{downsampling_layer.2} parent=0 // loop_pre_header
    _
  $region3: #{downsampling_layer.2} parent=0 // loop_header
    %s10 = sphi 0, %s14
    %p11 = scmp.ge.s32.totalorder %s10, 4
    %s20 = sphi 0, %s22
    %s23 = sphi 0, %s20
    %s24 = sphi 0, %s23
    %s40 = sphi 0, %s24
    %s44 = sphi 0, %s44
    %s46 = sphi 0, %s44
    %s47 = sphi 0, %s46
    %s61 = sphi 0, %s47
    %s67 = sphi 0, %s69
    %s70 = sphi 0, %s67
    %s71 = sphi 0, %s70
    %s87 = sphi 0, %s71
    %s93 = sphi 0, %s95
    %s96 = sphi 0, %s93
    %s97 = sphi 0, %s96
    %s113 = sphi 0, %s97
  $region4: #{downsampling_layer.2} parent=0 // loop_header_branch
    %13 = sbr.rel (%p11) target = $region8
  $region5: #{downsampling_layer.2} parent=0 // loop_body
    %s15 = ssub.s32 %s10, 1
    %s16 = ssub.s32 %s10, 2
    %s17 = sadd.s32 %s10, 1
    %s18 = ssub.s32 %s10, %s17
    %p19 = scmp.eq.s32.totalorder %s18, 0
    %s21 = sadd.s32 %s20, 1
    %s22 = scalar_select %p19, %s20, %s21
    %p25 = pneg %p19
    %p26 = scmp.eq.s32.totalorder %s10, 1
    %p27 = por %p25, %p26
    %p28 = scmp.ne.s32.totalorder %s20, %s23
    %p29 = scmp.eq.s32.totalorder %s10, 0
    %p30 = por %p28, %p29
    %p31 = scmp.ne.s32.totalorder %s20, %s23
    %p32 = scmp.eq.s32.totalorder %s15, 1
    %p33 = por %p31, %p32
    %p34 = scmp.ne.s32.totalorder %s23, %s24
    %p35 = scmp.eq.s32.totalorder %s15, 0
    %p36 = por %p34, %p35
    %p37 = scmp.ne.s32.totalorder %s23, %s24
    %p38 = scmp.eq.s32.totalorder %s16, 1
    %p39 = por %p37, %p38
    %p41 = scmp.ne.s32.totalorder %s24, %s40
    %p42 = scmp.eq.s32.totalorder %s16, 0
    %p43 = por %p41, %p42
    %s45 = sadd.s32 %s44, 1
    %p48 = scmp.eq.s32.totalorder %s10, 1
    %p49 = scmp.ne.s32.totalorder %s44, %s46
    %p50 = scmp.eq.s32.totalorder %s10, 0
    %p51 = por %p49, %p50
    %p52 = scmp.ne.s32.totalorder %s44, %s46
    %p53 = scmp.eq.s32.totalorder %s15, 1
    %p54 = por %p52, %p53
    %p55 = scmp.ne.s32.totalorder %s46, %s47
    %p56 = scmp.eq.s32.totalorder %s15, 0
    %p57 = por %p55, %p56
    %p58 = scmp.ne.s32.totalorder %s46, %s47
    %p59 = scmp.eq.s32.totalorder %s16, 1
    %p60 = por %p58, %p59
    %p62 = scmp.ne.s32.totalorder %s47, %s61
    %p63 = scmp.eq.s32.totalorder %s16, 0
    %p64 = por %p62, %p63
    %s65 = ssub.s32 %s10, %s17
    %p66 = scmp.eq.s32.totalorder %s65, 0
    %s68 = sadd.s32 %s67, 1
    %s69 = scalar_select %p66, %s67, %s68
    %p72 = pneg %p66
    %p73 = scmp.eq.s32.totalorder %s10, 1
    %p74 = por %p72, %p73
    %p75 = scmp.ne.s32.totalorder %s67, %s70
    %p76 = scmp.eq.s32.totalorder %s10, 0
    %p77 = por %p75, %p76
    %p78 = scmp.ne.s32.totalorder %s67, %s70
    %p79 = scmp.eq.s32.totalorder %s15, 1
    %p80 = por %p78, %p79
    %p81 = scmp.ne.s32.totalorder %s70, %s71
    %p82 = scmp.eq.s32.totalorder %s15, 0
    %p83 = por %p81, %p82
    %p84 = scmp.ne.s32.totalorder %s70, %s71
    %p85 = scmp.eq.s32.totalorder %s16, 1
    %p86 = por %p84, %p85
    %p88 = scmp.ne.s32.totalorder %s71, %s87
    %p89 = scmp.eq.s32.totalorder %s16, 0
    %p90 = por %p88, %p89
    %s91 = ssub.s32 %s10, %s17
    %p92 = scmp.eq.s32.totalorder %s91, 0
    %s94 = sadd.s32 %s93, 1
    %s95 = scalar_select %p92, %s93, %s94
    %p98 = pneg %p92
    %p99 = scmp.eq.s32.totalorder %s10, 1
    %p100 = por %p98, %p99
    %p101 = scmp.ne.s32.totalorder %s93, %s96
    %p102 = scmp.eq.s32.totalorder %s10, 0
    %p103 = por %p101, %p102
    %p104 = scmp.ne.s32.totalorder %s93, %s96
    %p105 = scmp.eq.s32.totalorder %s15, 1
    %p106 = por %p104, %p105
    %p107 = scmp.ne.s32.totalorder %s96, %s97
    %p108 = scmp.eq.s32.totalorder %s15, 0
    %p109 = por %p107, %p108
    %p110 = scmp.ne.s32.totalorder %s96, %s97
    %p111 = scmp.eq.s32.totalorder %s16, 1
    %p112 = por %p110, %p111
    %p114 = scmp.ne.s32.totalorder %s97, %s113
    %p115 = scmp.eq.s32.totalorder %s16, 0
    %p116 = por %p114, %p115
    %p117 = scmp.le.s32.totalorder 1, %s10
    %p118 = scmp.lt.s32.totalorder %s10, 3
    %p119 = pnand %p117, %p118
    %p120 = pneg %p119
    // Predicated region
    $region9: #{downsampling_layer.2} parent=5 // pred_check
      _
    $region10: #{downsampling_layer.2} parent=5 // pred_check_branch
      %122 = sbr.rel (%p119) target = $region12
    $region11: #{downsampling_layer.2} parent=5 // pred_region
      %s123 = ssub.s32 %s10, 1
      // Predicated region
      $region13: #{downsampling_layer.2} parent=11 // pred_check
        %p124 = pneg %p57
      $region14: #{downsampling_layer.2} parent=11 // pred_check_branch
        %126 = sbr.rel (%p124) target = $region16
      $region15: #{downsampling_layer.2} parent=11 // pred_region
        _
      $region16: #{downsampling_layer.2} parent=11 // pred_fallthru
        _
    $region12: #{downsampling_layer.2} parent=5 // pred_fallthru
      _
    %p127 = scmp.lt.s32.totalorder %s10, 2
    // Predicated region
    $region17: #{downsampling_layer.2} parent=5 // pred_check
      %p128 = pneg %p127
    $region18: #{downsampling_layer.2} parent=5 // pred_check_branch
      %130 = sbr.rel (%p128) target = $region20
    $region19: #{downsampling_layer.2} parent=5 // pred_region
      // Predicated region
      $region21: #{downsampling_layer.2} parent=19 // pred_check
        %p131 = pneg %p30
      $region22: #{downsampling_layer.2} parent=19 // pred_check_branch
        %133 = sbr.rel (%p131) target = $region24
      $region23: #{downsampling_layer.2} parent=19 // pred_region
        %p134 = scmp.lt.s32.totalorder %s10, 1
        %s135 = scalar_select %p134, %s10, 1
        %s136 = smul.addr %s135, 18
        %s137 = smul.addr %s136, 8
        %s138 = scalar_lea.vmem %s0, %s137
      $region24: #{downsampling_layer.2} parent=19 // pred_fallthru
        _
    $region20: #{downsampling_layer.2} parent=5 // pred_fallthru
      _
    %p139 = scmp.le.s32.totalorder 1, %s10
    %p140 = scmp.lt.s32.totalorder %s10, 3
    %p141 = pnand %p139, %p140
    %p142 = pneg %p141
    // Predicated region
    $region25: #{downsampling_layer.2} parent=5 // pred_check
      _
    $region26: #{downsampling_layer.2} parent=5 // pred_check_branch
      %144 = sbr.rel (%p141) target = $region28
    $region27: #{downsampling_layer.2} parent=5 // pred_region
      %s145 = ssub.s32 %s10, 1
      %p146 = scmp.lt.s32.totalorder %s15, 1
      %s147 = scalar_select %p146, %s15, 1
      %s148 = smul.addr %s147, 18
      %s149 = smul.addr %s148, 8
      %s150 = scalar_lea.vmem %s0, %s149
      %p151 = pneg %p36
      %p152 = pneg %p33
      %p153 = pneg %p57
      %p154 = pneg %p54
      %p155 = pneg %p83
      %p156 = pneg %p80
      %p157 = scmp.lt.s32.totalorder %s15, 1
      %s158 = scalar_select %p157, %s15, 1
      %s159 = smul.addr %s158, 8
      %s160 = smul.addr %s159, 8
      %s161 = scalar_lea.vmem %s2, %s160
      %p162 = pneg %p109
      %p163 = pneg %p106
      %p164 = scmp.lt.s32.totalorder %s15, 1
      %s165 = scalar_select %p164, %s15, 1
      %s166 = smul.addr %s165, 2
      %s167 = scalar_lea.vmem %s3, %s166
      %p168 = scmp.lt.s32.totalorder %s15, 1
      %s169 = scalar_select %p168, %s15, 1
      %s170 = smul.addr %s169, 18
      %s171 = smul.addr %s170, 8
      %s172 = scalar_lea.vmem %s0, %s171
      %p173 = scmp.lt.s32.totalorder %s15, 1
      %s174 = scalar_select %p173, %s15, 1
      %s175 = smul.addr %s174, 8
      %s176 = smul.addr %s175, 8
      %s177 = scalar_lea.vmem %s2, %s176
      %p178 = scmp.lt.s32.totalorder %s15, 1
      %s179 = scalar_select %p178, %s15, 1
      %s180 = smul.addr %s179, 2
      %s181 = scalar_lea.vmem %s3, %s180
      %v182 = vld [vmem:[%s172] sm:$0xff]
      %v183 = vld [vmem:[%s172 + $0x8] sm:$0xff]
      %v184 = vld [vmem:[%s172 + $0x10] sm:$0xff]
      %v185 = vld [vmem:[%s172 + $0x18] sm:$0xff]
      %v186 = vld [vmem:[%s172 + $0x20] sm:$0xff]
      %v187 = vld [vmem:[%s172 + $0x28] sm:$0xff]
      %v188 = vld [vmem:[%s172 + $0x30] sm:$0xff]
      %v189 = vld [vmem:[%s172 + $0x38] sm:$0xff]
      %v190 = vld [vmem:[%s1] sm:$0xff]
      %v191 = vld [vmem:[%s1 + $0x8] sm:$0xf]
      %s192 = scalar_lea.vmem %s172, 72
      %v193 = vld [vmem:[%s192] sm:$0xff]
      %v194 = vld [vmem:[%s192 + $0x8] sm:$0xff]
      %v195 = vld [vmem:[%s192 + $0x10] sm:$0xff]
      %v196 = vld [vmem:[%s192 + $0x18] sm:$0xff]
      %v197 = vld [vmem:[%s192 + $0x20] sm:$0xff]
      %v198 = vld [vmem:[%s192 + $0x28] sm:$0xff]
      %v199 = vld [vmem:[%s192 + $0x30] sm:$0xff]
      %v200 = vld [vmem:[%s192 + $0x38] sm:$0xff]
      %s201 = scalar_lea.vmem %s1, 16
      %v202 = vld [vmem:[%s201] sm:$0xff]
      %v203 = vld [vmem:[%s201 + $0x8] sm:$0xf]
      %vm204 = vcmask 97280
      %v206 = vsel %vm204, %v193, 0
      %v209 = vsel %vm204, %v194, 0
      %v212 = vsel %vm204, %v195, 0
      %v215 = vsel %vm204, %v196, 0
      %v218 = vsel %vm204, %v197, 0
      %v221 = vsel %vm204, %v198, 0
      %v224 = vsel %vm204, %v199, 0
      %v227 = vsel %vm204, %v200, 0
      %vm229 = vcmask 1043456
      %v231 = vsel %vm229, %v203, 0
      %233 = vmatpush.msra.mxu0 0.0
      %234 = vmatpush.msra.mxu0 0.0
      %235 = vmatpush.msra.mxu0 0.0
      %236 = vmatpush.msra.mxu0 0.0
      %237 = vmatpush.msra.mxu0 0.0
      %238 = vmatpush.msra.mxu0 0.0
      %239 = vmatpush.msra.mxu0 0.0
      %240 = vmatpush.msra.mxu0 0.0
      %241 = vmatpush.msra.mxu0 0.0
      %242 = vmatpush.msra.mxu0 0.0
      %243 = vmatpush.msra.mxu0 0.0
      %244 = vmatpush.msra.mxu0 0.0
      %245 = vmatpush.msra.mxu0 0.0
      %246 = vmatpush.msra.mxu0 0.0
      %247 = vmatpush.msra.mxu0 %v231
      %248 = vmatpush.msra.mxu0 %v202
      %249 = vmatmul.f32.gmra.mxu0 %v206
      %v250 = vpop.f32.mrf.mxu0
      %v251 = vadd.f32 0.0, %v250
      %252 = vmatmul.f32.gmra.mxu0 %v209
      %v253 = vpop.f32.mrf.mxu0
      %v254 = vadd.f32 0.0, %v253
      %255 = vmatmul.f32.gmra.mxu0 %v212
      %v256 = vpop.f32.mrf.mxu0
      %v257 = vadd.f32 0.0, %v256
      %258 = vmatmul.f32.gmra.mxu0 %v215
      %v259 = vpop.f32.mrf.mxu0
      %v260 = vadd.f32 0.0, %v259
      %261 = vmatmul.f32.gmra.mxu0 %v218
      %v262 = vpop.f32.mrf.mxu0
      %v263 = vadd.f32 0.0, %v262
      %264 = vmatmul.f32.gmra.mxu0 %v221
      %v265 = vpop.f32.mrf.mxu0
      %v266 = vadd.f32 0.0, %v265
      %267 = vmatmul.f32.gmra.mxu0 %v224
      %v268 = vpop.f32.mrf.mxu0
      %v269 = vadd.f32 0.0, %v268
      %270 = vmatmul.f32.gmra.mxu0 %v227
      %v271 = vpop.f32.mrf.mxu0
      %v272 = vadd.f32 0.0, %v271
      %273 = vdwg.mxu0
      %v275 = vsel %vm204, %v182, 0
      %v278 = vsel %vm204, %v183, 0
      %v281 = vsel %vm204, %v184, 0
      %v284 = vsel %vm204, %v185, 0
      %v287 = vsel %vm204, %v186, 0
      %v290 = vsel %vm204, %v187, 0
      %v293 = vsel %vm204, %v188, 0
      %v296 = vsel %vm204, %v189, 0
      %v299 = vsel %vm229, %v191, 0
      %301 = vmatpush.msra.mxu0 0.0
      %302 = vmatpush.msra.mxu0 0.0
      %303 = vmatpush.msra.mxu0 0.0
      %304 = vmatpush.msra.mxu0 0.0
      %305 = vmatpush.msra.mxu0 0.0
      %306 = vmatpush.msra.mxu0 0.0
      %307 = vmatpush.msra.mxu0 0.0
      %308 = vmatpush.msra.mxu0 0.0
      %309 = vmatpush.msra.mxu0 0.0
      %310 = vmatpush.msra.mxu0 0.0
      %311 = vmatpush.msra.mxu0 0.0
      %312 = vmatpush.msra.mxu0 0.0
      %313 = vmatpush.msra.mxu0 0.0
      %314 = vmatpush.msra.mxu0 0.0
      %315 = vmatpush.msra.mxu0 %v299
      %316 = vmatpush.msra.mxu0 %v190
      %317 = vmatmul.f32.gmra.mxu0 %v275
      %v318 = vpop.f32.mrf.mxu0
      %v319 = vadd.f32 %v251, %v318
      %320 = vmatmul.f32.gmra.mxu0 %v278
      %v321 = vpop.f32.mrf.mxu0
      %v322 = vadd.f32 %v254, %v321
      %323 = vmatmul.f32.gmra.mxu0 %v281
      %v324 = vpop.f32.mrf.mxu0
      %v325 = vadd.f32 %v257, %v324
      %326 = vmatmul.f32.gmra.mxu0 %v284
      %v327 = vpop.f32.mrf.mxu0
      %v328 = vadd.f32 %v260, %v327
      %329 = vmatmul.f32.gmra.mxu0 %v287
      %v330 = vpop.f32.mrf.mxu0
      %v331 = vadd.f32 %v263, %v330
      %332 = vmatmul.f32.gmra.mxu0 %v290
      %v333 = vpop.f32.mrf.mxu0
      %v334 = vadd.f32 %v266, %v333
      %335 = vmatmul.f32.gmra.mxu0 %v293
      %v336 = vpop.f32.mrf.mxu0
      %v337 = vadd.f32 %v269, %v336
      %338 = vmatmul.f32.gmra.mxu0 %v296
      %v339 = vpop.f32.mrf.mxu0
      %v340 = vadd.f32 %v272, %v339
      %341 = vdwg.mxu0
      %v342 = vld [vmem:[%s172 + $0x8] sm:$0xff]
      %v343 = vld [vmem:[%s172 + $0x10] sm:$0xff]
      %v344 = vld [vmem:[%s172 + $0x18] sm:$0xff]
      %v345 = vld [vmem:[%s172 + $0x20] sm:$0xff]
      %v346 = vld [vmem:[%s172 + $0x28] sm:$0xff]
      %v347 = vld [vmem:[%s172 + $0x30] sm:$0xff]
      %v348 = vld [vmem:[%s172 + $0x38] sm:$0xff]
      %v349 = vld [vmem:[%s172 + $0x40] sm:$0xff]
      %s350 = scalar_lea.vmem %s1, 32
      %v351 = vld [vmem:[%s350] sm:$0xff]
      %v352 = vld [vmem:[%s350 + $0x8] sm:$0xf]
      %v354 = vsel %vm204, %v342, 0
      %v357 = vsel %vm204, %v343, 0
      %v360 = vsel %vm204, %v344, 0
      %v363 = vsel %vm204, %v345, 0
      %v366 = vsel %vm204, %v346, 0
      %v369 = vsel %vm204, %v347, 0
      %v372 = vsel %vm204, %v348, 0
      %v375 = vsel %vm204, %v349, 0
      %v378 = vsel %vm229, %v352, 0
      %380 = vmatpush.msra.mxu0 0.0
      %381 = vmatpush.msra.mxu0 0.0
      %382 = vmatpush.msra.mxu0 0.0
      %383 = vmatpush.msra.mxu0 0.0
      %384 = vmatpush.msra.mxu0 0.0
      %385 = vmatpush.msra.mxu0 0.0
      %386 = vmatpush.msra.mxu0 0.0
      %387 = vmatpush.msra.mxu0 0.0
      %388 = vmatpush.msra.mxu0 0.0
      %389 = vmatpush.msra.mxu0 0.0
      %390 = vmatpush.msra.mxu0 0.0
      %391 = vmatpush.msra.mxu0 0.0
      %392 = vmatpush.msra.mxu0 0.0
      %393 = vmatpush.msra.mxu0 0.0
      %394 = vmatpush.msra.mxu0 %v378
      %395 = vmatpush.msra.mxu0 %v351
      %396 = vmatmul.f32.gmra.mxu0 %v354
      %v397 = vpop.f32.mrf.mxu0
      %v398 = vadd.f32 0.0, %v397
      %399 = vmatmul.f32.gmra.mxu0 %v357
      %v400 = vpop.f32.mrf.mxu0
      %v401 = vadd.f32 0.0, %v400
      %402 = vmatmul.f32.gmra.mxu0 %v360
      %v403 = vpop.f32.mrf.mxu0
      %v404 = vadd.f32 0.0, %v403
      %405 = vmatmul.f32.gmra.mxu0 %v363
      %v406 = vpop.f32.mrf.mxu0
      %v407 = vadd.f32 0.0, %v406
      %408 = vmatmul.f32.gmra.mxu0 %v366
      %v409 = vpop.f32.mrf.mxu0
      %v410 = vadd.f32 0.0, %v409
      %411 = vmatmul.f32.gmra.mxu0 %v369
      %v412 = vpop.f32.mrf.mxu0
      %v413 = vadd.f32 0.0, %v412
      %414 = vmatmul.f32.gmra.mxu0 %v372
      %v415 = vpop.f32.mrf.mxu0
      %v416 = vadd.f32 0.0, %v415
      %417 = vmatmul.f32.gmra.mxu0 %v375
      %v418 = vpop.f32.mrf.mxu0
      %v419 = vadd.f32 0.0, %v418
      %420 = vdwg.mxu0
      %v421 = vadd.f32 %v319, %v398
      %v422 = vadd.f32 %v322, %v401
      %v423 = vadd.f32 %v325, %v404
      %v424 = vadd.f32 %v328, %v407
      %v425 = vadd.f32 %v331, %v410
      %v426 = vadd.f32 %v334, %v413
      %v427 = vadd.f32 %v337, %v416
      %v428 = vadd.f32 %v340, %v419
      %429 = vst [vmem:[%s177] sm:$0xff] %v421
      %430 = vst [vmem:[%s177 + $0x8] sm:$0xff] %v422
      %431 = vst [vmem:[%s177 + $0x10] sm:$0xff] %v423
      %432 = vst [vmem:[%s177 + $0x18] sm:$0xff] %v424
      %433 = vst [vmem:[%s177 + $0x20] sm:$0xff] %v425
      %434 = vst [vmem:[%s177 + $0x28] sm:$0xff] %v426
      %435 = vst [vmem:[%s177 + $0x30] sm:$0xff] %v427
      %436 = vst [vmem:[%s177 + $0x38] sm:$0xff] %v428
      %v437 = vadd.f32 %v421, %v422
      %v438 = vadd.f32 %v437, %v423
      %v439 = vadd.f32 %v438, %v424
      %v440 = vadd.f32 %v439, %v425
      %v441 = vadd.f32 %v440, %v426
      %v442 = vadd.f32 %v441, %v427
      %v443 = vadd.f32 %v442, %v428
      %v444 = vrot.slane %v443, 4
      %v445 = vadd.f32 %v443, %v444
      %v446 = vrot.slane %v445, 2
      %v447 = vadd.f32 %v445, %v446
      %v448 = vrot.slane %v447, 1
      %v449 = vadd.f32 %v447, %v448
      %450 = vst [vmem:[%s181] sm:$0x1] %v449
      %v451 = vmul.f32 %v421, %v421
      %v452 = vmul.f32 %v422, %v422
      %v453 = vmul.f32 %v423, %v423
      %v454 = vmul.f32 %v424, %v424
      %v455 = vmul.f32 %v425, %v425
      %v456 = vmul.f32 %v426, %v426
      %v457 = vmul.f32 %v427, %v427
      %v458 = vmul.f32 %v428, %v428
      %v459 = vadd.f32 %v451, %v452
      %v460 = vadd.f32 %v459, %v453
      %v461 = vadd.f32 %v460, %v454
      %v462 = vadd.f32 %v461, %v455
      %v463 = vadd.f32 %v462, %v456
      %v464 = vadd.f32 %v463, %v457
      %v465 = vadd.f32 %v464, %v458
      %v466 = vrot.slane %v465, 4
      %v467 = vadd.f32 %v465, %v466
      %v468 = vrot.slane %v467, 2
      %v469 = vadd.f32 %v467, %v468
      %v470 = vrot.slane %v469, 1
      %v471 = vadd.f32 %v469, %v470
      %472 = vst [vmem:[%s181 + $0x1] sm:$0x1] %v471
      %p473 = scmp.lt.s32.totalorder %s15, 1
      %s474 = scalar_select %p473, %s15, 1
      %s475 = smul.addr %s474, 8
      %s476 = smul.addr %s475, 8
      %s477 = scalar_lea.vmem %s2, %s476
      %p478 = scmp.lt.s32.totalorder %s15, 1
      %s479 = scalar_select %p478, %s15, 1
      %s480 = smul.addr %s479, 2
      %s481 = scalar_lea.vmem %s3, %s480
      // Predicated region
      $region29: #{downsampling_layer.2} parent=27 // pred_check
        %p482 = pneg %p80
      $region30: #{downsampling_layer.2} parent=27 // pred_check_branch
        %484 = sbr.rel (%p482) target = $region32
      $region31: #{downsampling_layer.2} parent=27 // pred_region
        _
      $region32: #{downsampling_layer.2} parent=27 // pred_fallthru
        _
      // Predicated region
      $region33: #{downsampling_layer.2} parent=27 // pred_check
        %p485 = pneg %p106
      $region34: #{downsampling_layer.2} parent=27 // pred_check_branch
        %487 = sbr.rel (%p485) target = $region36
      $region35: #{downsampling_layer.2} parent=27 // pred_region
        _
      $region36: #{downsampling_layer.2} parent=27 // pred_fallthru
        _
    $region28: #{downsampling_layer.2} parent=5 // pred_fallthru
      _
    %p488 = scmp.le.s32.totalorder 2, %s10
    // Predicated region
    $region37: #{downsampling_layer.2} parent=5 // pred_check
      %p489 = pneg %p488
    $region38: #{downsampling_layer.2} parent=5 // pred_check_branch
      %491 = sbr.rel (%p489) target = $region40
    $region39: #{downsampling_layer.2} parent=5 // pred_region
      %s492 = ssub.s32 %s10, 2
      // Predicated region
      $region41: #{downsampling_layer.2} parent=39 // pred_check
        %p493 = pneg %p86
      $region42: #{downsampling_layer.2} parent=39 // pred_check_branch
        %495 = sbr.rel (%p493) target = $region44
      $region43: #{downsampling_layer.2} parent=39 // pred_region
        %p496 = scmp.lt.s32.totalorder %s16, 1
        %s497 = scalar_select %p496, %s16, 1
        %s498 = smul.addr %s497, 8
        %s499 = smul.addr %s498, 8
        %s500 = scalar_lea.vmem %s2, %s499
      $region44: #{downsampling_layer.2} parent=39 // pred_fallthru
        _
      // Predicated region
      $region45: #{downsampling_layer.2} parent=39 // pred_check
        %p501 = pneg %p112
      $region46: #{downsampling_layer.2} parent=39 // pred_check_branch
        %503 = sbr.rel (%p501) target = $region48
      $region47: #{downsampling_layer.2} parent=39 // pred_region
        %p504 = scmp.lt.s32.totalorder %s16, 1
        %s505 = scalar_select %p504, %s16, 1
        %s506 = smul.addr %s505, 2
        %s507 = scalar_lea.vmem %s3, %s506
      $region48: #{downsampling_layer.2} parent=39 // pred_fallthru
        _
    $region40: #{downsampling_layer.2} parent=5 // pred_fallthru
      _
  $region6: #{downsampling_layer.2} parent=0 // loop_footer
    %s14 = sadd.s32 1, %s10
  $region7: #{downsampling_layer.2} parent=0 // loop_footer_branch
    %9 = sbr.rel target = $region3
  $region8: #{downsampling_layer.2} parent=0 // loop_exit
    _

</llo_original>
